<compile_context>
chip_gen: v6e
topology: v6e:2x2x1
jax: 0.10.0
libtpu: 0.0.40
codegen_flags: <defaults>
</compile_context>

<pallas_src>
import functools

import jax
import jax.numpy as jnp
from jax.experimental import pallas as pl
from jax.experimental.pallas import tpu as pltpu


def _triplet_kernel(a_ref, p_ref, n_ref, loss_ref, *,
                    margin, p_norm, eps, swap, n_rows):
    """Per-tile triplet margin loss: three (tile_n, D) tiles -> (tile_n, 1) losses."""
    i = pl.program_id(0)
    tile_n = a_ref.shape[0]

    a = a_ref[...]
    pos = p_ref[...]
    neg = n_ref[...]

    def pair_dist(x, y):
        d = x - y + eps                       # PyTorch pairwise_distance adds eps
        if p_norm == 2.0:
            return jnp.sqrt(jnp.sum(d * d, axis=1, keepdims=True))
        if p_norm == 1.0:
            return jnp.sum(jnp.abs(d), axis=1, keepdims=True)
        s = jnp.sum(jnp.abs(d) ** p_norm, axis=1, keepdims=True)
        return s ** (1.0 / p_norm)

    d_ap = pair_dist(a, pos)
    d_an = pair_dist(a, neg)
    if swap:
        d_an = jnp.minimum(d_an, pair_dist(pos, neg))

    loss = jnp.maximum(d_ap - d_an + margin, 0.0)           # (tile_n, 1)

    # Mask rows past the true batch size: the last tile may be partial and the
    # input DMA brings unspecified data for those rows.
    row = i * tile_n + jax.lax.broadcasted_iota(jnp.int32, (tile_n, 1), 0)
    loss = jnp.where(row < n_rows, loss, 0.0)

    loss_ref[...] = loss.astype(loss_ref.dtype)


def _pick_tile_n(n, d, itemsize, vmem_budget_bytes=24 * 1024 * 1024):
    """Largest row tile such that 3 double-buffered input tiles fit the budget."""
    per_row = 2 * 3 * d * itemsize            # 3 inputs x double buffering
    rows = max(8, vmem_budget_bytes // per_row)
    rows = min(int(rows), 1024)
    rows = (rows // 8) * 8                    # sublane alignment
    n_ceil = ((n + 7) // 8) * 8               # no point exceeding the batch
    return max(8, min(rows, n_ceil))


def triplet_margin_loss(anchor, positive, negative, *, margin=1.0, p=2.0,
                        eps=1e-6, swap=False, reduction="mean", tile_n=None):
    """Pallas forward of nn.TripletMarginLoss. anchor/positive/negative: (N, D)."""
    n, d = anchor.shape
    dtype = anchor.dtype
    itemsize = jnp.dtype(dtype).itemsize

    if tile_n is None:
        tile_n = _pick_tile_n(n, d, itemsize)

    grid = (pl.cdiv(n, tile_n),)

    kernel = functools.partial(
        _triplet_kernel, margin=float(margin), p_norm=float(p),
        eps=float(eps), swap=bool(swap), n_rows=n)

    # Double-buffered input tiles + output tile + slack.
    vmem_bytes = 2 * (3 * tile_n * d + tile_n) * itemsize + (4 << 20)
    vmem_bytes = int(min(max(vmem_bytes, 8 << 20), 48 << 20))

    row_spec = pl.BlockSpec((tile_n, d), lambda i: (i, 0))

    loss = pl.pallas_call(
        kernel,
        out_shape=jax.ShapeDtypeStruct((n, 1), dtype),
        grid_spec=pltpu.PrefetchScalarGridSpec(
            num_scalar_prefetch=0,
            grid=grid,
            in_specs=[row_spec, row_spec, row_spec],
            out_specs=pl.BlockSpec((tile_n, 1), lambda i: (i, 0)),
        ),
        compiler_params=pltpu.CompilerParams(
            dimension_semantics=("parallel",),   # independent row tiles (v7x megacore)
            vmem_limit_bytes=vmem_bytes,
        ),
    )(anchor, positive, negative)

    loss = loss[:, 0]
    if reduction == "none":
        return loss
    if reduction == "sum":
        return jnp.sum(loss)
    if reduction == "mean":
        return jnp.sum(loss) / n
    raise ValueError(f"unknown reduction: {reduction}")


def _reference_triplet(a, pos, neg, margin, p, eps, swap, reduction):
    """Plain-JAX reference matching F.triplet_margin_loss semantics."""
    def pdist(x, y):
        diff = x - y + eps
        if p == 2.0:
            return jnp.sqrt(jnp.sum(diff * diff, axis=1))
        if p == 1.0:
            return jnp.sum(jnp.abs(diff), axis=1)
        return jnp.sum(jnp.abs(diff) ** p, axis=1) ** (1.0 / p)

    d_ap = pdist(a, pos)
    d_an = pdist(a, neg)
    if swap:
        d_an = jnp.minimum(d_an, pdist(pos, neg))
    loss = jnp.maximum(d_ap - d_an + margin, 0.0)
    if reduction == "none":
        return loss
    if reduction == "sum":
        return jnp.sum(loss)
    return jnp.mean(loss)


if __name__ == "__main__":
    key = jax.random.PRNGKey(0)
    N, D = 100, 128                      # shapes from the nn.TripletMarginLoss docstring
    k1, k2, k3 = jax.random.split(key, 3)
    anchor = jax.random.normal(k1, (N, D), dtype=jnp.float32)
    positive = jax.random.normal(k2, (N, D), dtype=jnp.float32)
    negative = jax.random.normal(k3, (N, D), dtype=jnp.float32)

    cases = [
        dict(margin=1.0, p=2.0, eps=1e-6, swap=False, reduction="mean"),
        dict(margin=1.0, p=2.0, eps=1e-6, swap=False, reduction="sum"),
        dict(margin=1.0, p=2.0, eps=1e-6, swap=False, reduction="none"),
        dict(margin=0.5, p=2.0, eps=1e-6, swap=True, reduction="mean"),
        dict(margin=1.0, p=1.0, eps=1e-6, swap=False, reduction="mean"),
    ]

    ok = True
    for cfg in cases:
        out = triplet_margin_loss(anchor, positive, negative, **cfg)
        out = jax.block_until_ready(out)
        ref = _reference_triplet(anchor, positive, negative,
                                 cfg["margin"], cfg["p"], cfg["eps"],
                                 cfg["swap"], cfg["reduction"])
        ok = ok and bool(jnp.allclose(out, ref, atol=1e-4, rtol=1e-5))

    print("KERNEL_OK" if ok else "KERNEL_MISMATCH")
</pallas_src>

<mosaic_0001>
module attributes {stable_mosaic.version = 11 : i64} {
  func.func @_triplet_kernel(%arg0: i32, %arg1: memref<104x128xf32, #tpu.memory_space<vmem>>, %arg2: memref<104x128xf32, #tpu.memory_space<vmem>>, %arg3: memref<104x128xf32, #tpu.memory_space<vmem>>, %arg4: memref<104x1xf32, #tpu.memory_space<vmem>>) attributes {dimension_semantics = [#tpu.dimension_semantics<parallel>], iteration_bounds = array<i64: 1>, scalar_prefetch = 0 : i64, scratch_operands = 0 : i64, tpu.core_type = #tpu.core_type<tc>, window_params = [{transform_indices = @transform_0, window_bounds = array<i64: 104, 128>}, {transform_indices = @transform_1, window_bounds = array<i64: 104, 128>}, {transform_indices = @transform_2, window_bounds = array<i64: 104, 128>}, {transform_indices = @transform_3, window_bounds = array<i64: 104, 1>}]} {
    %c0 = arith.constant 0 : index
    %c0_0 = arith.constant 0 : index
    %0 = vector.load %arg1[%c0, %c0_0] : memref<104x128xf32, #tpu.memory_space<vmem>>, vector<104x128xf32>
    %c0_1 = arith.constant 0 : index
    %c0_2 = arith.constant 0 : index
    %1 = vector.load %arg2[%c0_1, %c0_2] : memref<104x128xf32, #tpu.memory_space<vmem>>, vector<104x128xf32>
    %c0_3 = arith.constant 0 : index
    %c0_4 = arith.constant 0 : index
    %2 = vector.load %arg3[%c0_3, %c0_4] : memref<104x128xf32, #tpu.memory_space<vmem>>, vector<104x128xf32>
    %3 = arith.subf %0, %1 : vector<104x128xf32>
    %cst = arith.constant 9.99999997E-7 : f32
    %4 = vector.broadcast %cst : f32 to vector<104x128xf32>
    %5 = arith.addf %3, %4 : vector<104x128xf32>
    %6 = arith.mulf %5, %5 : vector<104x128xf32>
    %cst_5 = arith.constant dense<0.000000e+00> : vector<104xf32>
    %7 = vector.multi_reduction <add>, %6, %cst_5 [1] : vector<104x128xf32> to vector<104xf32>
    %8 = vector.shape_cast %7 : vector<104xf32> to vector<104x1xf32>
    %9 = math.sqrt %8 : vector<104x1xf32>
    %10 = arith.subf %0, %2 : vector<104x128xf32>
    %cst_6 = arith.constant 9.99999997E-7 : f32
    %11 = vector.broadcast %cst_6 : f32 to vector<104x128xf32>
    %12 = arith.addf %10, %11 : vector<104x128xf32>
    %13 = arith.mulf %12, %12 : vector<104x128xf32>
    %cst_7 = arith.constant dense<0.000000e+00> : vector<104xf32>
    %14 = vector.multi_reduction <add>, %13, %cst_7 [1] : vector<104x128xf32> to vector<104xf32>
    %15 = vector.shape_cast %14 : vector<104xf32> to vector<104x1xf32>
    %16 = math.sqrt %15 : vector<104x1xf32>
    %17 = arith.subf %9, %16 : vector<104x1xf32>
    %cst_8 = arith.constant 1.000000e+00 : f32
    %18 = vector.broadcast %cst_8 : f32 to vector<104x1xf32>
    %19 = arith.addf %17, %18 : vector<104x1xf32>
    %cst_9 = arith.constant 0.000000e+00 : f32
    %20 = vector.broadcast %cst_9 : f32 to vector<104x1xf32>
    %21 = arith.maximumf %19, %20 : vector<104x1xf32>
    %c104_i32 = arith.constant 104 : i32
    %22 = arith.muli %arg0, %c104_i32 : i32
    %23 = tpu.iota {dimensions = array<i32: 0>} : vector<104x1xi32>
    %24 = vector.broadcast %22 : i32 to vector<104x1xi32>
    %25 = arith.addi %24, %23 : vector<104x1xi32>
    %c100_i32 = arith.constant 100 : i32
    %26 = vector.broadcast %c100_i32 : i32 to vector<104x1xi32>
    %27 = arith.cmpi slt, %25, %26 : vector<104x1xi32>
    %cst_10 = arith.constant 0.000000e+00 : f32
    %28 = vector.broadcast %cst_10 : f32 to vector<104x1xf32>
    %29 = arith.select %27, %21, %28 : vector<104x1xi1>, vector<104x1xf32>
    %c0_11 = arith.constant 0 : index
    %c0_12 = arith.constant 0 : index
    %30 = vector.load %arg4[%c0_11, %c0_12] : memref<104x1xf32, #tpu.memory_space<vmem>>, vector<104x1xf32>
    tpu.vector_store %arg4[%c0_11, %c0_12], %29 {strides = array<i32>} : memref<104x1xf32, #tpu.memory_space<vmem>>, vector<104x1xf32>,
    return
  }
  func.func @transform_0(%arg0: i32) -> (i32, i32) {
    %c0_i32 = arith.constant 0 : i32
    %c0_i32_0 = arith.constant 0 : i32
    return %arg0, %c0_i32 : i32, i32
  }
  func.func @transform_1(%arg0: i32) -> (i32, i32) {
    %c0_i32 = arith.constant 0 : i32
    %c0_i32_0 = arith.constant 0 : i32
    return %arg0, %c0_i32 : i32, i32
  }
  func.func @transform_2(%arg0: i32) -> (i32, i32) {
    %c0_i32 = arith.constant 0 : i32
    %c0_i32_0 = arith.constant 0 : i32
    return %arg0, %c0_i32 : i32, i32
  }
  func.func @transform_3(%arg0: i32) -> (i32, i32) {
    %c0_i32 = arith.constant 0 : i32
    %c0_i32_0 = arith.constant 0 : i32
    return %arg0, %c0_i32 : i32, i32
  }
}

</mosaic_0001>

<llo_original>
// kernel: tpu_custom_call.1
$region0: #{tpu_custom_call.1}
  #allocation0 [shape = 'u32[]', space=smem, size = 0x4, offset = 0x4, fixed_abs, tag = 'smem constant byte address 0x4 - core index']
  #allocation1 [shape = 'u32[144,128]{1,0:T(1,128)}', space=vmem, size = 0x12000, scoped, tag = 'internal scratch']
  %s0 = inlined_call_operand.hbm [shape: f32[100,128], index: 0, kind: input, shape index: {}]
  %s1 = inlined_call_operand.hbm [shape: f32[100,128], index: 1, kind: input, shape index: {}]
  %s2 = inlined_call_operand.hbm [shape: f32[100,128], index: 2, kind: input, shape index: {}]
  %s3 = inlined_call_operand.vmem [shape: f32[100,1], index: 3, kind: output, shape index: {}]
  %s4 = sld [smem:[#allocation0]]
  $region34: #{tpu_custom_call.1} parent=0
    _
  %s6 = ssub.s32 1, %s4
  %s7 = scalar_select 0, %s6, %s4
  $region1: #{tpu_custom_call.1} parent=0
    #allocation2 [shape = 'u8[53248]{0}', space=vmem, size = 0xd000, scoped, tag = 'input window, operand 0, single buffered']
    #allocation3 [shape = 's32[1]{0}', space=sflag, size = 0x4, scoped, tag = 'scoped memory for tpu_custom_call.1']
    #allocation4 [shape = 'u8[53248]{0}', space=vmem, size = 0xd000, scoped, tag = 'input window, operand 1, single buffered']
    #allocation5 [shape = 's32[1]{0}', space=sflag, size = 0x4, scoped, tag = 'scoped memory for tpu_custom_call.1']
    #allocation6 [shape = 'u8[53248]{0}', space=vmem, size = 0xd000, scoped, tag = 'input window, operand 2, single buffered']
    %8 = vsyncpa [#allocation3], 0
    %9 = vsyncpa [#allocation5], 0
    // Predicated region
    $region2: #{tpu_custom_call.1} parent=1 // pred_check
      _
    $region3: #{tpu_custom_call.1} parent=1 // pred_check_branch
      %11 = sbr.rel (0) target = $region5
    $region4: #{tpu_custom_call.1} parent=1 // pred_region
      %s13 = ssub.s32 1664, 1664
      %14 = vsyncadd [#allocation3], %s13
      %s15 = sshll.u32 [#allocation2], 4
      %s16 = int_to_ptr.vmem [resolvable:$true] %s15
      %21 = dma.hbm_to_vmem [thread:$0]  %s0, 1664, %s16, [#allocation3], 128, 128, 8
    $region5: #{tpu_custom_call.1} parent=1 // pred_fallthru
      _
    // Predicated region
    $region6: #{tpu_custom_call.1} parent=1 // pred_check
      _
    $region7: #{tpu_custom_call.1} parent=1 // pred_check_branch
      %23 = sbr.rel (0) target = $region9
    $region8: #{tpu_custom_call.1} parent=1 // pred_region
      %s25 = ssub.s32 1664, 1664
      %26 = vsyncadd [#allocation5], %s25
      %s27 = sshll.u32 [#allocation4], 4
      %s28 = int_to_ptr.vmem [resolvable:$true] %s27
      %33 = dma.hbm_to_vmem [thread:$0]  %s1, 1664, %s28, [#allocation5], 128, 128, 8
    $region9: #{tpu_custom_call.1} parent=1 // pred_fallthru
      _
    // Predicated region
    $region10: #{tpu_custom_call.1} parent=1 // pred_check
      _
    $region11: #{tpu_custom_call.1} parent=1 // pred_check_branch
      %35 = sbr.rel (0) target = $region13
    $region12: #{tpu_custom_call.1} parent=1 // pred_region
      %s37 = ssub.s32 1664, 1664
      %38 = vsyncadd [#allocation5], %s37
      %s39 = sshll.u32 [#allocation6], 4
      %s40 = int_to_ptr.vmem [resolvable:$true] %s39
      %45 = dma.hbm_to_vmem [thread:$0]  %s2, 1664, %s40, [#allocation5], 128, 128, 8
    $region13: #{tpu_custom_call.1} parent=1 // pred_fallthru
      _
    // Predicated region
    $region14: #{tpu_custom_call.1} parent=1 // pred_check
      _
    $region15: #{tpu_custom_call.1} parent=1 // pred_check_branch
      %47 = sbr.rel (0) target = $region17
    $region16: #{tpu_custom_call.1} parent=1 // pred_region
      %48 = dma.done [#allocation3], 1664
    $region17: #{tpu_custom_call.1} parent=1 // pred_fallthru
      _
    // Predicated region
    $region18: #{tpu_custom_call.1} parent=1 // pred_check
      _
    $region19: #{tpu_custom_call.1} parent=1 // pred_check_branch
      %50 = sbr.rel (0) target = $region21
    $region20: #{tpu_custom_call.1} parent=1 // pred_region
      %51 = dma.done [#allocation5], 1664
    $region21: #{tpu_custom_call.1} parent=1 // pred_fallthru
      _
    // Predicated region
    $region22: #{tpu_custom_call.1} parent=1 // pred_check
      _
    $region23: #{tpu_custom_call.1} parent=1 // pred_check_branch
      %53 = sbr.rel (0) target = $region25
    $region24: #{tpu_custom_call.1} parent=1 // pred_region
      %54 = dma.done [#allocation5], 1664
    $region25: #{tpu_custom_call.1} parent=1 // pred_fallthru
      _
    %v55 = vld [vmem:[#allocation2] sm:$0xff]
    %v56 = vld [vmem:[#allocation2 + $0x8] sm:$0xff]
    %v57 = vld [vmem:[#allocation2 + $0x10] sm:$0xff]
    %v58 = vld [vmem:[#allocation2 + $0x18] sm:$0xff]
    %v59 = vld [vmem:[#allocation2 + $0x20] sm:$0xff]
    %v60 = vld [vmem:[#allocation2 + $0x28] sm:$0xff]
    %v61 = vld [vmem:[#allocation2 + $0x30] sm:$0xff]
    %v62 = vld [vmem:[#allocation2 + $0x38] sm:$0xff]
    %v63 = vld [vmem:[#allocation2 + $0x40] sm:$0xff]
    %v64 = vld [vmem:[#allocation2 + $0x48] sm:$0xff]
    %v65 = vld [vmem:[#allocation2 + $0x50] sm:$0xff]
    %v66 = vld [vmem:[#allocation2 + $0x58] sm:$0xff]
    %v67 = vld [vmem:[#allocation2 + $0x60] sm:$0xff]
    %v68 = vld [vmem:[#allocation4] sm:$0xff]
    %v69 = vld [vmem:[#allocation4 + $0x8] sm:$0xff]
    %v70 = vld [vmem:[#allocation4 + $0x10] sm:$0xff]
    %v71 = vld [vmem:[#allocation4 + $0x18] sm:$0xff]
    %v72 = vld [vmem:[#allocation4 + $0x20] sm:$0xff]
    %v73 = vld [vmem:[#allocation4 + $0x28] sm:$0xff]
    %v74 = vld [vmem:[#allocation4 + $0x30] sm:$0xff]
    %v75 = vld [vmem:[#allocation4 + $0x38] sm:$0xff]
    %v76 = vld [vmem:[#allocation4 + $0x40] sm:$0xff]
    %v77 = vld [vmem:[#allocation4 + $0x48] sm:$0xff]
    %v78 = vld [vmem:[#allocation4 + $0x50] sm:$0xff]
    %v79 = vld [vmem:[#allocation4 + $0x58] sm:$0xff]
    %v80 = vld [vmem:[#allocation4 + $0x60] sm:$0xff]
    %v81 = vld [vmem:[#allocation6] sm:$0xff]
    %v82 = vld [vmem:[#allocation6 + $0x8] sm:$0xff]
    %v83 = vld [vmem:[#allocation6 + $0x10] sm:$0xff]
    %v84 = vld [vmem:[#allocation6 + $0x18] sm:$0xff]
    %v85 = vld [vmem:[#allocation6 + $0x20] sm:$0xff]
    %v86 = vld [vmem:[#allocation6 + $0x28] sm:$0xff]
    %v87 = vld [vmem:[#allocation6 + $0x30] sm:$0xff]
    %v88 = vld [vmem:[#allocation6 + $0x38] sm:$0xff]
    %v89 = vld [vmem:[#allocation6 + $0x40] sm:$0xff]
    %v90 = vld [vmem:[#allocation6 + $0x48] sm:$0xff]
    %v91 = vld [vmem:[#allocation6 + $0x50] sm:$0xff]
    %v92 = vld [vmem:[#allocation6 + $0x58] sm:$0xff]
    %v93 = vld [vmem:[#allocation6 + $0x60] sm:$0xff]
    %v94 = vsub.f32 %v55, %v68
    %v95 = vsub.f32 %v56, %v69
    %v96 = vsub.f32 %v57, %v70
    %v97 = vsub.f32 %v58, %v71
    %v98 = vsub.f32 %v59, %v72
    %v99 = vsub.f32 %v60, %v73
    %v100 = vsub.f32 %v61, %v74
    %v101 = vsub.f32 %v62, %v75
    %v102 = vsub.f32 %v63, %v76
    %v103 = vsub.f32 %v64, %v77
    %v104 = vsub.f32 %v65, %v78
    %v105 = vsub.f32 %v66, %v79
    %v106 = vsub.f32 %v67, %v80
    %v107 = vadd.f32 %v94, 1e-06
    %v108 = vadd.f32 %v95, 1e-06
    %v109 = vadd.f32 %v96, 1e-06
    %v110 = vadd.f32 %v97, 1e-06
    %v111 = vadd.f32 %v98, 1e-06
    %v112 = vadd.f32 %v99, 1e-06
    %v113 = vadd.f32 %v100, 1e-06
    %v114 = vadd.f32 %v101, 1e-06
    %v115 = vadd.f32 %v102, 1e-06
    %v116 = vadd.f32 %v103, 1e-06
    %v117 = vadd.f32 %v104, 1e-06
    %v118 = vadd.f32 %v105, 1e-06
    %v119 = vadd.f32 %v106, 1e-06
    %v120 = vmul.f32 %v107, %v107
    %v121 = vmul.f32 %v108, %v108
    %v122 = vmul.f32 %v109, %v109
    %v123 = vmul.f32 %v110, %v110
    %v124 = vmul.f32 %v111, %v111
    %v125 = vmul.f32 %v112, %v112
    %v126 = vmul.f32 %v113, %v113
    %v127 = vmul.f32 %v114, %v114
    %v128 = vmul.f32 %v115, %v115
    %v129 = vmul.f32 %v116, %v116
    %v130 = vmul.f32 %v117, %v117
    %v131 = vmul.f32 %v118, %v118
    %v132 = vmul.f32 %v119, %v119
    %133 = vadd.xlane.f32.xlu0 %v120
    %v134 = vpop.xlane.xlu0 %133
    %135 = vadd.xlane.f32.xlu0 %v121
    %v136 = vpop.xlane.xlu0 %135
    %137 = vadd.xlane.f32.xlu0 %v122
    %v138 = vpop.xlane.xlu0 %137
    %139 = vadd.xlane.f32.xlu0 %v123
    %v140 = vpop.xlane.xlu0 %139
    %141 = vadd.xlane.f32.xlu0 %v124
    %v142 = vpop.xlane.xlu0 %141
    %143 = vadd.xlane.f32.xlu0 %v125
    %v144 = vpop.xlane.xlu0 %143
    %145 = vadd.xlane.f32.xlu0 %v126
    %v146 = vpop.xlane.xlu0 %145
    %147 = vadd.xlane.f32.xlu0 %v127
    %v148 = vpop.xlane.xlu0 %147
    %149 = vadd.xlane.f32.xlu0 %v128
    %v150 = vpop.xlane.xlu0 %149
    %151 = vadd.xlane.f32.xlu0 %v129
    %v152 = vpop.xlane.xlu0 %151
    %153 = vadd.xlane.f32.xlu0 %v130
    %v154 = vpop.xlane.xlu0 %153
    %155 = vadd.xlane.f32.xlu0 %v131
    %v156 = vpop.xlane.xlu0 %155
    %157 = vadd.xlane.f32.xlu0 %v132
    %v158 = vpop.xlane.xlu0 %157
    %v159 = vrsqrt.pop %v134
    %v160 = vmul.f32 %v134, %v159
    %vm161 = vcmp.eq.f32.partialorder %v134, inf
    %v162 = vsel %vm161, %v134, %v160
    %vm163 = vcmp.eq.f32.partialorder %v134, 0.0
    %v164 = vand.u32 %v134, 2147483648
    %v165 = vsel %vm163, %v164, %v162
    %v166 = vrsqrt.pop %v136
    %v167 = vmul.f32 %v136, %v166
    %vm168 = vcmp.eq.f32.partialorder %v136, inf
    %v169 = vsel %vm168, %v136, %v167
    %vm170 = vcmp.eq.f32.partialorder %v136, 0.0
    %v171 = vand.u32 %v136, 2147483648
    %v172 = vsel %vm170, %v171, %v169
    %v173 = vrsqrt.pop %v138
    %v174 = vmul.f32 %v138, %v173
    %vm175 = vcmp.eq.f32.partialorder %v138, inf
    %v176 = vsel %vm175, %v138, %v174
    %vm177 = vcmp.eq.f32.partialorder %v138, 0.0
    %v178 = vand.u32 %v138, 2147483648
    %v179 = vsel %vm177, %v178, %v176
    %v180 = vrsqrt.pop %v140
    %v181 = vmul.f32 %v140, %v180
    %vm182 = vcmp.eq.f32.partialorder %v140, inf
    %v183 = vsel %vm182, %v140, %v181
    %vm184 = vcmp.eq.f32.partialorder %v140, 0.0
    %v185 = vand.u32 %v140, 2147483648
    %v186 = vsel %vm184, %v185, %v183
    %v187 = vrsqrt.pop %v142
    %v188 = vmul.f32 %v142, %v187
    %vm189 = vcmp.eq.f32.partialorder %v142, inf
    %v190 = vsel %vm189, %v142, %v188
    %vm191 = vcmp.eq.f32.partialorder %v142, 0.0
    %v192 = vand.u32 %v142, 2147483648
    %v193 = vsel %vm191, %v192, %v190
    %v194 = vrsqrt.pop %v144
    %v195 = vmul.f32 %v144, %v194
    %vm196 = vcmp.eq.f32.partialorder %v144, inf
    %v197 = vsel %vm196, %v144, %v195
    %vm198 = vcmp.eq.f32.partialorder %v144, 0.0
    %v199 = vand.u32 %v144, 2147483648
    %v200 = vsel %vm198, %v199, %v197
    %v201 = vrsqrt.pop %v146
    %v202 = vmul.f32 %v146, %v201
    %vm203 = vcmp.eq.f32.partialorder %v146, inf
    %v204 = vsel %vm203, %v146, %v202
    %vm205 = vcmp.eq.f32.partialorder %v146, 0.0
    %v206 = vand.u32 %v146, 2147483648
    %v207 = vsel %vm205, %v206, %v204
    %v208 = vrsqrt.pop %v148
    %v209 = vmul.f32 %v148, %v208
    %vm210 = vcmp.eq.f32.partialorder %v148, inf
    %v211 = vsel %vm210, %v148, %v209
    %vm212 = vcmp.eq.f32.partialorder %v148, 0.0
    %v213 = vand.u32 %v148, 2147483648
    %v214 = vsel %vm212, %v213, %v211
    %v215 = vrsqrt.pop %v150
    %v216 = vmul.f32 %v150, %v215
    %vm217 = vcmp.eq.f32.partialorder %v150, inf
    %v218 = vsel %vm217, %v150, %v216
    %vm219 = vcmp.eq.f32.partialorder %v150, 0.0
    %v220 = vand.u32 %v150, 2147483648
    %v221 = vsel %vm219, %v220, %v218
    %v222 = vrsqrt.pop %v152
    %v223 = vmul.f32 %v152, %v222
    %vm224 = vcmp.eq.f32.partialorder %v152, inf
    %v225 = vsel %vm224, %v152, %v223
    %vm226 = vcmp.eq.f32.partialorder %v152, 0.0
    %v227 = vand.u32 %v152, 2147483648
    %v228 = vsel %vm226, %v227, %v225
    %v229 = vrsqrt.pop %v154
    %v230 = vmul.f32 %v154, %v229
    %vm231 = vcmp.eq.f32.partialorder %v154, inf
    %v232 = vsel %vm231, %v154, %v230
    %vm233 = vcmp.eq.f32.partialorder %v154, 0.0
    %v234 = vand.u32 %v154, 2147483648
    %v235 = vsel %vm233, %v234, %v232
    %v236 = vrsqrt.pop %v156
    %v237 = vmul.f32 %v156, %v236
    %vm238 = vcmp.eq.f32.partialorder %v156, inf
    %v239 = vsel %vm238, %v156, %v237
    %vm240 = vcmp.eq.f32.partialorder %v156, 0.0
    %v241 = vand.u32 %v156, 2147483648
    %v242 = vsel %vm240, %v241, %v239
    %v243 = vrsqrt.pop %v158
    %v244 = vmul.f32 %v158, %v243
    %vm245 = vcmp.eq.f32.partialorder %v158, inf
    %v246 = vsel %vm245, %v158, %v244
    %vm247 = vcmp.eq.f32.partialorder %v158, 0.0
    %v248 = vand.u32 %v158, 2147483648
    %v249 = vsel %vm247, %v248, %v246
    %v250 = vsub.f32 %v55, %v81
    %v251 = vsub.f32 %v56, %v82
    %v252 = vsub.f32 %v57, %v83
    %v253 = vsub.f32 %v58, %v84
    %v254 = vsub.f32 %v59, %v85
    %v255 = vsub.f32 %v60, %v86
    %v256 = vsub.f32 %v61, %v87
    %v257 = vsub.f32 %v62, %v88
    %v258 = vsub.f32 %v63, %v89
    %v259 = vsub.f32 %v64, %v90
    %v260 = vsub.f32 %v65, %v91
    %v261 = vsub.f32 %v66, %v92
    %v262 = vsub.f32 %v67, %v93
    %v263 = vadd.f32 %v250, 1e-06
    %v264 = vadd.f32 %v251, 1e-06
    %v265 = vadd.f32 %v252, 1e-06
    %v266 = vadd.f32 %v253, 1e-06
    %v267 = vadd.f32 %v254, 1e-06
    %v268 = vadd.f32 %v255, 1e-06
    %v269 = vadd.f32 %v256, 1e-06
    %v270 = vadd.f32 %v257, 1e-06
    %v271 = vadd.f32 %v258, 1e-06
    %v272 = vadd.f32 %v259, 1e-06
    %v273 = vadd.f32 %v260, 1e-06
    %v274 = vadd.f32 %v261, 1e-06
    %v275 = vadd.f32 %v262, 1e-06
    %v276 = vmul.f32 %v263, %v263
    %v277 = vmul.f32 %v264, %v264
    %v278 = vmul.f32 %v265, %v265
    %v279 = vmul.f32 %v266, %v266
    %v280 = vmul.f32 %v267, %v267
    %v281 = vmul.f32 %v268, %v268
    %v282 = vmul.f32 %v269, %v269
    %v283 = vmul.f32 %v270, %v270
    %v284 = vmul.f32 %v271, %v271
    %v285 = vmul.f32 %v272, %v272
    %v286 = vmul.f32 %v273, %v273
    %v287 = vmul.f32 %v274, %v274
    %v288 = vmul.f32 %v275, %v275
    %289 = vadd.xlane.f32.xlu0 %v276
    %v290 = vpop.xlane.xlu0 %289
    %291 = vadd.xlane.f32.xlu0 %v277
    %v292 = vpop.xlane.xlu0 %291
    %293 = vadd.xlane.f32.xlu0 %v278
    %v294 = vpop.xlane.xlu0 %293
    %295 = vadd.xlane.f32.xlu0 %v279
    %v296 = vpop.xlane.xlu0 %295
    %297 = vadd.xlane.f32.xlu0 %v280
    %v298 = vpop.xlane.xlu0 %297
    %299 = vadd.xlane.f32.xlu0 %v281
    %v300 = vpop.xlane.xlu0 %299
    %301 = vadd.xlane.f32.xlu0 %v282
    %v302 = vpop.xlane.xlu0 %301
    %303 = vadd.xlane.f32.xlu0 %v283
    %v304 = vpop.xlane.xlu0 %303
    %305 = vadd.xlane.f32.xlu0 %v284
    %v306 = vpop.xlane.xlu0 %305
    %307 = vadd.xlane.f32.xlu0 %v285
    %v308 = vpop.xlane.xlu0 %307
    %309 = vadd.xlane.f32.xlu0 %v286
    %v310 = vpop.xlane.xlu0 %309
    %311 = vadd.xlane.f32.xlu0 %v287
    %v312 = vpop.xlane.xlu0 %311
    %313 = vadd.xlane.f32.xlu0 %v288
    %v314 = vpop.xlane.xlu0 %313
    %v315 = vrsqrt.pop %v290
    %v316 = vmul.f32 %v290, %v315
    %vm317 = vcmp.eq.f32.partialorder %v290, inf
    %v318 = vsel %vm317, %v290, %v316
    %vm319 = vcmp.eq.f32.partialorder %v290, 0.0
    %v320 = vand.u32 %v290, 2147483648
    %v321 = vsel %vm319, %v320, %v318
    %v322 = vrsqrt.pop %v292
    %v323 = vmul.f32 %v292, %v322
    %vm324 = vcmp.eq.f32.partialorder %v292, inf
    %v325 = vsel %vm324, %v292, %v323
    %vm326 = vcmp.eq.f32.partialorder %v292, 0.0
    %v327 = vand.u32 %v292, 2147483648
    %v328 = vsel %vm326, %v327, %v325
    %v329 = vrsqrt.pop %v294
    %v330 = vmul.f32 %v294, %v329
    %vm331 = vcmp.eq.f32.partialorder %v294, inf
    %v332 = vsel %vm331, %v294, %v330
    %vm333 = vcmp.eq.f32.partialorder %v294, 0.0
    %v334 = vand.u32 %v294, 2147483648
    %v335 = vsel %vm333, %v334, %v332
    %v336 = vrsqrt.pop %v296
    %v337 = vmul.f32 %v296, %v336
    %vm338 = vcmp.eq.f32.partialorder %v296, inf
    %v339 = vsel %vm338, %v296, %v337
    %vm340 = vcmp.eq.f32.partialorder %v296, 0.0
    %v341 = vand.u32 %v296, 2147483648
    %v342 = vsel %vm340, %v341, %v339
    %v343 = vrsqrt.pop %v298
    %v344 = vmul.f32 %v298, %v343
    %vm345 = vcmp.eq.f32.partialorder %v298, inf
    %v346 = vsel %vm345, %v298, %v344
    %vm347 = vcmp.eq.f32.partialorder %v298, 0.0
    %v348 = vand.u32 %v298, 2147483648
    %v349 = vsel %vm347, %v348, %v346
    %v350 = vrsqrt.pop %v300
    %v351 = vmul.f32 %v300, %v350
    %vm352 = vcmp.eq.f32.partialorder %v300, inf
    %v353 = vsel %vm352, %v300, %v351
    %vm354 = vcmp.eq.f32.partialorder %v300, 0.0
    %v355 = vand.u32 %v300, 2147483648
    %v356 = vsel %vm354, %v355, %v353
    %v357 = vrsqrt.pop %v302
    %v358 = vmul.f32 %v302, %v357
    %vm359 = vcmp.eq.f32.partialorder %v302, inf
    %v360 = vsel %vm359, %v302, %v358
    %vm361 = vcmp.eq.f32.partialorder %v302, 0.0
    %v362 = vand.u32 %v302, 2147483648
    %v363 = vsel %vm361, %v362, %v360
    %v364 = vrsqrt.pop %v304
    %v365 = vmul.f32 %v304, %v364
    %vm366 = vcmp.eq.f32.partialorder %v304, inf
    %v367 = vsel %vm366, %v304, %v365
    %vm368 = vcmp.eq.f32.partialorder %v304, 0.0
    %v369 = vand.u32 %v304, 2147483648
    %v370 = vsel %vm368, %v369, %v367
    %v371 = vrsqrt.pop %v306
    %v372 = vmul.f32 %v306, %v371
    %vm373 = vcmp.eq.f32.partialorder %v306, inf
    %v374 = vsel %vm373, %v306, %v372
    %vm375 = vcmp.eq.f32.partialorder %v306, 0.0
    %v376 = vand.u32 %v306, 2147483648
    %v377 = vsel %vm375, %v376, %v374
    %v378 = vrsqrt.pop %v308
    %v379 = vmul.f32 %v308, %v378
    %vm380 = vcmp.eq.f32.partialorder %v308, inf
    %v381 = vsel %vm380, %v308, %v379
    %vm382 = vcmp.eq.f32.partialorder %v308, 0.0
    %v383 = vand.u32 %v308, 2147483648
    %v384 = vsel %vm382, %v383, %v381
    %v385 = vrsqrt.pop %v310
    %v386 = vmul.f32 %v310, %v385
    %vm387 = vcmp.eq.f32.partialorder %v310, inf
    %v388 = vsel %vm387, %v310, %v386
    %vm389 = vcmp.eq.f32.partialorder %v310, 0.0
    %v390 = vand.u32 %v310, 2147483648
    %v391 = vsel %vm389, %v390, %v388
    %v392 = vrsqrt.pop %v312
    %v393 = vmul.f32 %v312, %v392
    %vm394 = vcmp.eq.f32.partialorder %v312, inf
    %v395 = vsel %vm394, %v312, %v393
    %vm396 = vcmp.eq.f32.partialorder %v312, 0.0
    %v397 = vand.u32 %v312, 2147483648
    %v398 = vsel %vm396, %v397, %v395
    %v399 = vrsqrt.pop %v314
    %v400 = vmul.f32 %v314, %v399
    %vm401 = vcmp.eq.f32.partialorder %v314, inf
    %v402 = vsel %vm401, %v314, %v400
    %vm403 = vcmp.eq.f32.partialorder %v314, 0.0
    %v404 = vand.u32 %v314, 2147483648
    %v405 = vsel %vm403, %v404, %v402
    %v406 = vsub.f32 %v165, %v321
    %v407 = vsub.f32 %v172, %v328
    %v408 = vsub.f32 %v179, %v335
    %v409 = vsub.f32 %v186, %v342
    %v410 = vsub.f32 %v193, %v349
    %v411 = vsub.f32 %v200, %v356
    %v412 = vsub.f32 %v207, %v363
    %v413 = vsub.f32 %v214, %v370
    %v414 = vsub.f32 %v221, %v377
    %v415 = vsub.f32 %v228, %v384
    %v416 = vsub.f32 %v235, %v391
    %v417 = vsub.f32 %v242, %v398
    %v418 = vsub.f32 %v249, %v405
    %v419 = vadd.f32 %v406, 1.0
    %v420 = vadd.f32 %v407, 1.0
    %v421 = vadd.f32 %v408, 1.0
    %v422 = vadd.f32 %v409, 1.0
    %v423 = vadd.f32 %v410, 1.0
    %v424 = vadd.f32 %v411, 1.0
    %v425 = vadd.f32 %v412, 1.0
    %v426 = vadd.f32 %v413, 1.0
    %v427 = vadd.f32 %v414, 1.0
    %v428 = vadd.f32 %v415, 1.0
    %v429 = vadd.f32 %v416, 1.0
    %v430 = vadd.f32 %v417, 1.0
    %v431 = vadd.f32 %v418, 1.0
    %v432 = vmax.f32 %v419, 0.0
    %v433 = vmax.f32 %v420, 0.0
    %v434 = vmax.f32 %v421, 0.0
    %v435 = vmax.f32 %v422, 0.0
    %v436 = vmax.f32 %v423, 0.0
    %v437 = vmax.f32 %v424, 0.0
    %v438 = vmax.f32 %v425, 0.0
    %v439 = vmax.f32 %v426, 0.0
    %v440 = vmax.f32 %v427, 0.0
    %v441 = vmax.f32 %v428, 0.0
    %v442 = vmax.f32 %v429, 0.0
    %v443 = vmax.f32 %v430, 0.0
    %v444 = vmax.f32 %v431, 0.0
    %s445 = smul.u32 0, 104
    %v446 = vlaneseq
    %v447 = vshrl.u32 %v446, 7
    %v448 = vadd.s32 %v447, 8
    %v449 = vadd.s32 %v447, 16
    %v450 = vadd.s32 %v447, 24
    %v451 = vadd.s32 %v447, 32
    %v452 = vadd.s32 %v447, 40
    %v453 = vadd.s32 %v447, 48
    %v454 = vadd.s32 %v447, 56
    %v455 = vadd.s32 %v447, 64
    %v456 = vadd.s32 %v447, 72
    %v457 = vadd.s32 %v447, 80
    %v458 = vadd.s32 %v447, 88
    %v459 = vadd.s32 %v447, 96
    %v460 = vstv %s445
    %v461 = vadd.s32 %v460, %v447
    %v462 = vadd.s32 %v460, %v448
    %v463 = vadd.s32 %v460, %v449
    %v464 = vadd.s32 %v460, %v450
    %v465 = vadd.s32 %v460, %v451
    %v466 = vadd.s32 %v460, %v452
    %v467 = vadd.s32 %v460, %v453
    %v468 = vadd.s32 %v460, %v454
    %v469 = vadd.s32 %v460, %v455
    %v470 = vadd.s32 %v460, %v456
    %v471 = vadd.s32 %v460, %v457
    %v472 = vadd.s32 %v460, %v458
    %v473 = vadd.s32 %v460, %v459
    %vm474 = vcmp.lt.s32.totalorder %v461, 100
    %vm475 = vcmp.lt.s32.totalorder %v462, 100
    %vm476 = vcmp.lt.s32.totalorder %v463, 100
    %vm477 = vcmp.lt.s32.totalorder %v464, 100
    %vm478 = vcmp.lt.s32.totalorder %v465, 100
    %vm479 = vcmp.lt.s32.totalorder %v466, 100
    %vm480 = vcmp.lt.s32.totalorder %v467, 100
    %vm481 = vcmp.lt.s32.totalorder %v468, 100
    %vm482 = vcmp.lt.s32.totalorder %v469, 100
    %vm483 = vcmp.lt.s32.totalorder %v470, 100
    %vm484 = vcmp.lt.s32.totalorder %v471, 100
    %vm485 = vcmp.lt.s32.totalorder %v472, 100
    %vm486 = vcmp.lt.s32.totalorder %v473, 100
    %v487 = vsel %vm474, %v432, 0.0
    %v488 = vsel %vm475, %v433, 0.0
    %v489 = vsel %vm476, %v434, 0.0
    %v490 = vsel %vm477, %v435, 0.0
    %v491 = vsel %vm478, %v436, 0.0
    %v492 = vsel %vm479, %v437, 0.0
    %v493 = vsel %vm480, %v438, 0.0
    %v494 = vsel %vm481, %v439, 0.0
    %v495 = vsel %vm482, %v440, 0.0
    %v496 = vsel %vm483, %v441, 0.0
    %v497 = vsel %vm484, %v442, 0.0
    %v498 = vsel %vm485, %v443, 0.0
    %v499 = vsel %vm486, %v444, 0.0
    %vm500 = vcmask 7168
    %501 = vst.msk [vmem:[%s3] sm:$0xff] %vm500, %v487
    %502 = vst.msk [vmem:[%s3 + $0x8] sm:$0xff] %vm500, %v488
    %503 = vst.msk [vmem:[%s3 + $0x10] sm:$0xff] %vm500, %v489
    %504 = vst.msk [vmem:[%s3 + $0x18] sm:$0xff] %vm500, %v490
    %505 = vst.msk [vmem:[%s3 + $0x20] sm:$0xff] %vm500, %v491
    %506 = vst.msk [vmem:[%s3 + $0x28] sm:$0xff] %vm500, %v492
    %507 = vst.msk [vmem:[%s3 + $0x30] sm:$0xff] %vm500, %v493
    %508 = vst.msk [vmem:[%s3 + $0x38] sm:$0xff] %vm500, %v494
    %509 = vst.msk [vmem:[%s3 + $0x40] sm:$0xff] %vm500, %v495
    %510 = vst.msk [vmem:[%s3 + $0x48] sm:$0xff] %vm500, %v496
    %511 = vst.msk [vmem:[%s3 + $0x50] sm:$0xff] %vm500, %v497
    %512 = vst.msk [vmem:[%s3 + $0x58] sm:$0xff] %vm500, %v498
    %513 = vst.msk [vmem:[%s3 + $0x60] sm:$0xff] %vm500, %v499
    // Predicated region
    $region26: #{tpu_custom_call.1} parent=1 // pred_check
      _
    $region27: #{tpu_custom_call.1} parent=1 // pred_check_branch
      %515 = sbr.rel (0) target = $region29
    $region28: #{tpu_custom_call.1} parent=1 // pred_region
      _
    $region29: #{tpu_custom_call.1} parent=1 // pred_fallthru
      _
    // Predicated region
    $region30: #{tpu_custom_call.1} parent=1 // pred_check
      _
    $region31: #{tpu_custom_call.1} parent=1 // pred_check_branch
      %517 = sbr.rel (0) target = $region33
    $region32: #{tpu_custom_call.1} parent=1 // pred_region
      _
    $region33: #{tpu_custom_call.1} parent=1 // pred_fallthru
      _
    %518 = vsyncpa [#allocation3], 1
    %519 = vsyncpa [#allocation5], 1

</llo_original>
